<compile_context>
chip_gen: v6e
topology: v6e:2x2x1
jax: 0.10.0
libtpu: 0.0.40
codegen_flags: <defaults>
</compile_context>

<pallas_src>
import functools

import jax
import jax.numpy as jnp
from jax.experimental import pallas as pl
from jax.experimental.pallas import tpu as pltpu

LOG_STD_MIN = -1.0
LOG_STD_MAX = 1.0
LN_EPS = 1e-5          # torch.nn.LayerNorm default
MAX_TILE_ROWS = 4096   # VMEM-safe batch tile cap (state+out slabs ~4.5 MiB dbl-buffered)


def _round_up(x, m):
    return ((x + m - 1) // m) * m


def _layernorm(h, gamma, beta):
    # Single-pass stats: var = E[h^2] - E[h]^2 (h in (-1,1) -> no cancellation).
    s1 = jnp.mean(h, axis=-1, keepdims=True)
    s2 = jnp.mean(h * h, axis=-1, keepdims=True)
    var = s2 - s1 * s1
    return (h - s1) * jax.lax.rsqrt(var + LN_EPS) * gamma + beta


def policy_kernel(x_ref,
                  w1_ref, b1_ref, g1_ref, be1_ref,
                  w2_ref, b2_ref, g2_ref, be2_ref,
                  wh_ref, bh_ref,
                  out_ref, *, num_actions):
    x = x_ref[...].astype(jnp.float32)

    # backbone layer 1: Linear -> Tanh -> LayerNorm
    h = jnp.tanh(
        jnp.dot(x, w1_ref[...], preferred_element_type=jnp.float32) + b1_ref[...]
    )
    h = _layernorm(h, g1_ref[...], be1_ref[...])

    # backbone layer 2: Linear -> Tanh -> LayerNorm
    h = jnp.tanh(
        jnp.dot(h, w2_ref[...], preferred_element_type=jnp.float32) + b2_ref[...]
    )
    h = _layernorm(h, g2_ref[...], be2_ref[...])

    # fused heads: one matmul into a lane-dense (tb, head_pad) slab.
    out = jnp.dot(h, wh_ref[...], preferred_element_type=jnp.float32) + bh_ref[...]

    # fused clamp: only log_std columns [A, 2A) are clipped, mean untouched.
    col = jax.lax.broadcasted_iota(jnp.int32, out.shape, dimension=1)
    is_log_std = (col >= num_actions) & (col < 2 * num_actions)
    out = jnp.where(is_log_std, jnp.clip(out, LOG_STD_MIN, LOG_STD_MAX), out)

    out_ref[...] = out.astype(out_ref.dtype)


def prepare_params(params):
    """One-time param prep: fuse mean/log_std heads into a lane-dense slab."""
    if "wh" in params:
        return params
    H = params["w1"].shape[1]
    A = params["wm"].shape[1]
    head = 2 * A
    head_pad = _round_up(head, 128)  # lane-dense output slab
    wh = jnp.zeros((H, head_pad), jnp.float32)
    wh = wh.at[:, :A].set(params["wm"]).at[:, A:head].set(params["ws"])
    bh = jnp.zeros((1, head_pad), jnp.float32)
    bh = bh.at[:, :A].set(params["bm"]).at[:, A:head].set(params["bs"])
    out = dict(params)
    out["wh"], out["bh"] = wh, bh
    return out


def policy_forward(state, params, *, tile_b=None):
    """PolicyNetwork.forward -> (mean, log_std) via one Pallas kernel."""
    params = prepare_params(params)  # no-op if already prepared

    B, num_inputs = state.shape
    H = params["w1"].shape[1]
    A = params["wm"].shape[1]
    head_pad = params["wh"].shape[1]

    # Batch tile: multiple of 8 sublanes; by default target >= 2 grid steps
    # (v7x megacore sharding of the "parallel" axis), capped for VMEM.
    b8 = _round_up(max(B, 1), 8)
    if tile_b is None:
        tb = _round_up(pl.cdiv(b8, 2), 8)
        tb = max(8, min(tb, MAX_TILE_ROWS))
    else:
        tb = max(8, min(_round_up(tile_b, 8), b8))

    grid = (pl.cdiv(B, tb),)  # final partial block handled by masked boundary

    kernel = functools.partial(policy_kernel, num_actions=A)

    # State/output are tiled over the batch grid axis; weights/biases use a
    # constant index_map so they stay VMEM-resident across grid steps.
    in_specs = [
        pl.BlockSpec((tb, num_inputs), lambda i: (i, 0)),   # state tile
        pl.BlockSpec((num_inputs, H), lambda i: (0, 0)),    # w1
        pl.BlockSpec((1, H), lambda i: (0, 0)),             # b1
        pl.BlockSpec((1, H), lambda i: (0, 0)),             # g1
        pl.BlockSpec((1, H), lambda i: (0, 0)),             # be1
        pl.BlockSpec((H, H), lambda i: (0, 0)),              # w2
        pl.BlockSpec((1, H), lambda i: (0, 0)),             # b2
        pl.BlockSpec((1, H), lambda i: (0, 0)),             # g2
        pl.BlockSpec((1, H), lambda i: (0, 0)),             # be2
        pl.BlockSpec((H, head_pad), lambda i: (0, 0)),      # fused head W
        pl.BlockSpec((1, head_pad), lambda i: (0, 0)),      # fused head b
    ]
    out_specs = pl.BlockSpec((tb, head_pad), lambda i: (i, 0))

    out = pl.pallas_call(
        kernel,
        grid=grid,
        in_specs=in_specs,
        out_specs=out_specs,
        out_shape=jax.ShapeDtypeStruct((B, head_pad), jnp.float32),
        compiler_params=pltpu.CompilerParams(
            dimension_semantics=("parallel",)),
    )(
        state.astype(jnp.float32),
        params["w1"], params["b1"], params["g1"], params["be1"],
        params["w2"], params["b2"], params["g2"], params["be2"],
        params["wh"], params["bh"],
    )

    mean = out[:, :A]
    log_std = out[:, A:2 * A]  # already clamped inside the kernel
    return mean, log_std


# ----------------------------- init & reference -----------------------------

def _xavier_uniform(key, fan_in, fan_out):
    bound = jnp.sqrt(6.0 / (fan_in + fan_out))
    # stored (fan_in, fan_out) so the kernel computes x @ W directly.
    return jax.random.uniform(key, (fan_in, fan_out), jnp.float32, -bound, bound)


def init_policy_params(key, num_inputs, num_actions, hidden=64):
    ks = jax.random.split(key, 8)

    def lin_bias(k, fan_in, n):
        b = 1.0 / jnp.sqrt(jnp.float32(fan_in))
        return jax.random.uniform(k, (1, n), jnp.float32, -b, b)

    return {
        "w1": _xavier_uniform(ks[0], num_inputs, hidden),
        "b1": lin_bias(ks[1], num_inputs, hidden),
        "g1": jnp.ones((1, hidden), jnp.float32),
        "be1": jnp.zeros((1, hidden), jnp.float32),
        "w2": _xavier_uniform(ks[2], hidden, hidden),
        "b2": lin_bias(ks[3], hidden, hidden),
        "g2": jnp.ones((1, hidden), jnp.float32),
        "be2": jnp.zeros((1, hidden), jnp.float32),
        "wm": _xavier_uniform(ks[4], hidden, num_actions),
        "bm": lin_bias(ks[5], hidden, num_actions),
        "ws": _xavier_uniform(ks[6], hidden, num_actions),
        "bs": lin_bias(ks[7], hidden, num_actions),
    }


def _reference_forward(state, p):
    def ln(h, g, b):
        mu = h.mean(-1, keepdims=True)
        var = ((h - mu) ** 2).mean(-1, keepdims=True)
        return (h - mu) / jnp.sqrt(var + LN_EPS) * g + b

    h = ln(jnp.tanh(state @ p["w1"] + p["b1"]), p["g1"], p["be1"])
    h = ln(jnp.tanh(h @ p["w2"] + p["b2"]), p["g2"], p["be2"])
    mean = h @ p["wm"] + p["bm"]
    log_std = jnp.clip(h @ p["ws"] + p["bs"], LOG_STD_MIN, LOG_STD_MAX)
    return mean, log_std


if __name__ == "__main__":
    key = jax.random.PRNGKey(0)
    k_params, k_state1, k_state2, k_state3 = jax.random.split(key, 4)

    NUM_INPUTS, NUM_ACTIONS = 16, 8
    params = prepare_params(init_policy_params(k_params, NUM_INPUTS, NUM_ACTIONS))

    # Small single-tile case.
    B = 8
    state = jax.random.normal(k_state1, (B, NUM_INPUTS), jnp.float32)
    mean, log_std = policy_forward(state, params)
    jax.block_until_ready((mean, log_std))

    ref_mean, ref_log_std = _reference_forward(state, params)
    assert mean.shape == (B, NUM_ACTIONS) and log_std.shape == (B, NUM_ACTIONS)
    assert jnp.allclose(mean, ref_mean, atol=1e-4, rtol=1e-4)
    assert jnp.allclose(log_std, ref_log_std, atol=1e-4, rtol=1e-4)
    assert float(jnp.max(log_std)) <= LOG_STD_MAX + 1e-6
    assert float(jnp.min(log_std)) >= LOG_STD_MIN - 1e-6

    # Multi-step grid with a partial (masked) final block, explicit tile.
    B2 = 40
    state2 = jax.random.normal(k_state2, (B2, NUM_INPUTS), jnp.float32)
    mean2, log_std2 = policy_forward(state2, params, tile_b=16)
    jax.block_until_ready((mean2, log_std2))
    ref_mean2, ref_log_std2 = _reference_forward(state2, params)
    assert mean2.shape == (B2, NUM_ACTIONS) and log_std2.shape == (B2, NUM_ACTIONS)
    assert jnp.allclose(mean2, ref_mean2, atol=1e-4, rtol=1e-4)
    assert jnp.allclose(log_std2, ref_log_std2, atol=1e-4, rtol=1e-4)

    # Ragged batch (not a multiple of 8) with the default auto-tile path
    # (2 grid steps, last block partially out of bounds, no host-side pad).
    B3 = 13
    state3 = jax.random.normal(k_state3, (B3, NUM_INPUTS), jnp.float32)
    mean3, log_std3 = policy_forward(state3, params)
    jax.block_until_ready((mean3, log_std3))
    ref_mean3, ref_log_std3 = _reference_forward(state3, params)
    assert mean3.shape == (B3, NUM_ACTIONS) and log_std3.shape == (B3, NUM_ACTIONS)
    assert jnp.allclose(mean3, ref_mean3, atol=1e-4, rtol=1e-4)
    assert jnp.allclose(log_std3, ref_log_std3, atol=1e-4, rtol=1e-4)

    # TODO(synk): evaluate()/get_action() sampling (Normal.sample, tanh squash,
    # log-prob) is left to host-side JAX RNG; only the deterministic forward()
    # is kernelized.
    print("KERNEL_OK")
</pallas_src>

<mosaic_0001>
module attributes {stable_mosaic.version = 11 : i64} {
  func.func @policy_kernel(%arg0: i32, %arg1: memref<8x16xf32, #tpu.memory_space<vmem>>, %arg2: memref<16x64xf32, #tpu.memory_space<vmem>>, %arg3: memref<1x64xf32, #tpu.memory_space<vmem>>, %arg4: memref<1x64xf32, #tpu.memory_space<vmem>>, %arg5: memref<1x64xf32, #tpu.memory_space<vmem>>, %arg6: memref<64x64xf32, #tpu.memory_space<vmem>>, %arg7: memref<1x64xf32, #tpu.memory_space<vmem>>, %arg8: memref<1x64xf32, #tpu.memory_space<vmem>>, %arg9: memref<1x64xf32, #tpu.memory_space<vmem>>, %arg10: memref<64x128xf32, #tpu.memory_space<vmem>>, %arg11: memref<1x128xf32, #tpu.memory_space<vmem>>, %arg12: memref<8x128xf32, #tpu.memory_space<vmem>>) attributes {dimension_semantics = [#tpu.dimension_semantics<parallel>], iteration_bounds = array<i64: 1>, scalar_prefetch = 0 : i64, scratch_operands = 0 : i64, tpu.core_type = #tpu.core_type<tc>, window_params = [{transform_indices = @transform_0, window_bounds = array<i64: 8, 16>}, {pipeline_mode = #tpu.pipeline_mode<synchronous>, transform_indices = @transform_1, window_bounds = array<i64: 16, 64>}, {pipeline_mode = #tpu.pipeline_mode<synchronous>, transform_indices = @transform_2, window_bounds = array<i64: 1, 64>}, {pipeline_mode = #tpu.pipeline_mode<synchronous>, transform_indices = @transform_3, window_bounds = array<i64: 1, 64>}, {pipeline_mode = #tpu.pipeline_mode<synchronous>, transform_indices = @transform_4, window_bounds = array<i64: 1, 64>}, {pipeline_mode = #tpu.pipeline_mode<synchronous>, transform_indices = @transform_5, window_bounds = array<i64: 64, 64>}, {pipeline_mode = #tpu.pipeline_mode<synchronous>, transform_indices = @transform_6, window_bounds = array<i64: 1, 64>}, {pipeline_mode = #tpu.pipeline_mode<synchronous>, transform_indices = @transform_7, window_bounds = array<i64: 1, 64>}, {pipeline_mode = #tpu.pipeline_mode<synchronous>, transform_indices = @transform_8, window_bounds = array<i64: 1, 64>}, {pipeline_mode = #tpu.pipeline_mode<synchronous>, transform_indices = @transform_9, window_bounds = array<i64: 64, 128>}, {pipeline_mode = #tpu.pipeline_mode<synchronous>, transform_indices = @transform_10, window_bounds = array<i64: 1, 128>}, {transform_indices = @transform_11, window_bounds = array<i64: 8, 128>}]} {
    %c0 = arith.constant 0 : index
    %c0_0 = arith.constant 0 : index
    %0 = vector.load %arg1[%c0, %c0_0] : memref<8x16xf32, #tpu.memory_space<vmem>>, vector<8x16xf32>
    %c0_1 = arith.constant 0 : index
    %c0_2 = arith.constant 0 : index
    %1 = vector.load %arg2[%c0_1, %c0_2] : memref<16x64xf32, #tpu.memory_space<vmem>>, vector<16x64xf32>
    %cst = arith.constant dense<0.000000e+00> : vector<8x64xf32>
    %2 = tpu.matmul %0, %1, %cst {dimension_numbers = #tpu.dot_dimension_numbers<[1], [0], [0], [1], [0, 0, 1, 1], [], []>} : vector<8x16xf32>, vector<16x64xf32>, vector<8x64xf32> -> vector<8x64xf32>
    %c0_3 = arith.constant 0 : index
    %c0_4 = arith.constant 0 : index
    %3 = vector.load %arg3[%c0_3, %c0_4] : memref<1x64xf32, #tpu.memory_space<vmem>>, vector<1x64xf32>
    %4 = vector.broadcast %3 : vector<1x64xf32> to vector<8x64xf32>
    %5 = arith.addf %2, %4 : vector<8x64xf32>
    %6 = math.tanh %5 : vector<8x64xf32>
    %c0_5 = arith.constant 0 : index
    %c0_6 = arith.constant 0 : index
    %7 = vector.load %arg4[%c0_5, %c0_6] : memref<1x64xf32, #tpu.memory_space<vmem>>, vector<1x64xf32>
    %c0_7 = arith.constant 0 : index
    %c0_8 = arith.constant 0 : index
    %8 = vector.load %arg5[%c0_7, %c0_8] : memref<1x64xf32, #tpu.memory_space<vmem>>, vector<1x64xf32>
    %cst_9 = arith.constant dense<0.000000e+00> : vector<8xf32>
    %9 = vector.multi_reduction <add>, %6, %cst_9 [1] : vector<8x64xf32> to vector<8xf32>
    %10 = vector.shape_cast %9 : vector<8xf32> to vector<8x1xf32>
    %cst_10 = arith.constant 6.400000e+01 : f32
    %11 = vector.broadcast %cst_10 : f32 to vector<8x1xf32>
    %12 = arith.divf %10, %11 : vector<8x1xf32>
    %13 = arith.mulf %6, %6 : vector<8x64xf32>
    %cst_11 = arith.constant dense<0.000000e+00> : vector<8xf32>
    %14 = vector.multi_reduction <add>, %13, %cst_11 [1] : vector<8x64xf32> to vector<8xf32>
    %15 = vector.shape_cast %14 : vector<8xf32> to vector<8x1xf32>
    %cst_12 = arith.constant 6.400000e+01 : f32
    %16 = vector.broadcast %cst_12 : f32 to vector<8x1xf32>
    %17 = arith.divf %15, %16 : vector<8x1xf32>
    %18 = arith.mulf %12, %12 : vector<8x1xf32>
    %19 = arith.subf %17, %18 : vector<8x1xf32>
    %20 = vector.broadcast %12 : vector<8x1xf32> to vector<8x64xf32>
    %21 = arith.subf %6, %20 : vector<8x64xf32>
    %cst_13 = arith.constant 9.99999974E-6 : f32
    %22 = vector.broadcast %cst_13 : f32 to vector<8x1xf32>
    %23 = arith.addf %19, %22 : vector<8x1xf32>
    %24 = math.rsqrt %23 : vector<8x1xf32>
    %25 = vector.broadcast %24 : vector<8x1xf32> to vector<8x64xf32>
    %26 = arith.mulf %21, %25 : vector<8x64xf32>
    %27 = vector.broadcast %7 : vector<1x64xf32> to vector<8x64xf32>
    %28 = arith.mulf %26, %27 : vector<8x64xf32>
    %29 = vector.broadcast %8 : vector<1x64xf32> to vector<8x64xf32>
    %30 = arith.addf %28, %29 : vector<8x64xf32>
    %c0_14 = arith.constant 0 : index
    %c0_15 = arith.constant 0 : index
    %31 = vector.load %arg6[%c0_14, %c0_15] : memref<64x64xf32, #tpu.memory_space<vmem>>, vector<64x64xf32>
    %cst_16 = arith.constant dense<0.000000e+00> : vector<8x64xf32>
    %32 = tpu.matmul %30, %31, %cst_16 {dimension_numbers = #tpu.dot_dimension_numbers<[1], [0], [0], [1], [0, 0, 1, 1], [], []>} : vector<8x64xf32>, vector<64x64xf32>, vector<8x64xf32> -> vector<8x64xf32>
    %c0_17 = arith.constant 0 : index
    %c0_18 = arith.constant 0 : index
    %33 = vector.load %arg7[%c0_17, %c0_18] : memref<1x64xf32, #tpu.memory_space<vmem>>, vector<1x64xf32>
    %34 = vector.broadcast %33 : vector<1x64xf32> to vector<8x64xf32>
    %35 = arith.addf %32, %34 : vector<8x64xf32>
    %36 = math.tanh %35 : vector<8x64xf32>
    %c0_19 = arith.constant 0 : index
    %c0_20 = arith.constant 0 : index
    %37 = vector.load %arg8[%c0_19, %c0_20] : memref<1x64xf32, #tpu.memory_space<vmem>>, vector<1x64xf32>
    %c0_21 = arith.constant 0 : index
    %c0_22 = arith.constant 0 : index
    %38 = vector.load %arg9[%c0_21, %c0_22] : memref<1x64xf32, #tpu.memory_space<vmem>>, vector<1x64xf32>
    %cst_23 = arith.constant dense<0.000000e+00> : vector<8xf32>
    %39 = vector.multi_reduction <add>, %36, %cst_23 [1] : vector<8x64xf32> to vector<8xf32>
    %40 = vector.shape_cast %39 : vector<8xf32> to vector<8x1xf32>
    %cst_24 = arith.constant 6.400000e+01 : f32
    %41 = vector.broadcast %cst_24 : f32 to vector<8x1xf32>
    %42 = arith.divf %40, %41 : vector<8x1xf32>
    %43 = arith.mulf %36, %36 : vector<8x64xf32>
    %cst_25 = arith.constant dense<0.000000e+00> : vector<8xf32>
    %44 = vector.multi_reduction <add>, %43, %cst_25 [1] : vector<8x64xf32> to vector<8xf32>
    %45 = vector.shape_cast %44 : vector<8xf32> to vector<8x1xf32>
    %cst_26 = arith.constant 6.400000e+01 : f32
    %46 = vector.broadcast %cst_26 : f32 to vector<8x1xf32>
    %47 = arith.divf %45, %46 : vector<8x1xf32>
    %48 = arith.mulf %42, %42 : vector<8x1xf32>
    %49 = arith.subf %47, %48 : vector<8x1xf32>
    %50 = vector.broadcast %42 : vector<8x1xf32> to vector<8x64xf32>
    %51 = arith.subf %36, %50 : vector<8x64xf32>
    %cst_27 = arith.constant 9.99999974E-6 : f32
    %52 = vector.broadcast %cst_27 : f32 to vector<8x1xf32>
    %53 = arith.addf %49, %52 : vector<8x1xf32>
    %54 = math.rsqrt %53 : vector<8x1xf32>
    %55 = vector.broadcast %54 : vector<8x1xf32> to vector<8x64xf32>
    %56 = arith.mulf %51, %55 : vector<8x64xf32>
    %57 = vector.broadcast %37 : vector<1x64xf32> to vector<8x64xf32>
    %58 = arith.mulf %56, %57 : vector<8x64xf32>
    %59 = vector.broadcast %38 : vector<1x64xf32> to vector<8x64xf32>
    %60 = arith.addf %58, %59 : vector<8x64xf32>
    %c0_28 = arith.constant 0 : index
    %c0_29 = arith.constant 0 : index
    %61 = vector.load %arg10[%c0_28, %c0_29] : memref<64x128xf32, #tpu.memory_space<vmem>>, vector<64x128xf32>
    %cst_30 = arith.constant dense<0.000000e+00> : vector<8x128xf32>
    %62 = tpu.matmul %60, %61, %cst_30 {dimension_numbers = #tpu.dot_dimension_numbers<[1], [0], [0], [1], [0, 0, 1, 1], [], []>} : vector<8x64xf32>, vector<64x128xf32>, vector<8x128xf32> -> vector<8x128xf32>
    %c0_31 = arith.constant 0 : index
    %c0_32 = arith.constant 0 : index
    %63 = vector.load %arg11[%c0_31, %c0_32] : memref<1x128xf32, #tpu.memory_space<vmem>>, vector<1x128xf32>
    %64 = vector.broadcast %63 : vector<1x128xf32> to vector<8x128xf32>
    %65 = arith.addf %62, %64 : vector<8x128xf32>
    %66 = tpu.iota {dimensions = array<i32: 1>} : vector<8x128xi32>
    %c8_i32 = arith.constant 8 : i32
    %67 = vector.broadcast %c8_i32 : i32 to vector<8x128xi32>
    %68 = arith.cmpi sge, %66, %67 : vector<8x128xi32>
    %c16_i32 = arith.constant 16 : i32
    %69 = vector.broadcast %c16_i32 : i32 to vector<8x128xi32>
    %70 = arith.cmpi slt, %66, %69 : vector<8x128xi32>
    %71 = arith.andi %68, %70 : vector<8x128xi1>
    %cst_33 = arith.constant -1.000000e+00 : f32
    %cst_34 = arith.constant 1.000000e+00 : f32
    %72 = vector.broadcast %cst_33 : f32 to vector<8x128xf32>
    %73 = arith.maximumf %72, %65 : vector<8x128xf32>
    %74 = vector.broadcast %cst_34 : f32 to vector<8x128xf32>
    %75 = arith.minimumf %74, %73 : vector<8x128xf32>
    %76 = arith.select %71, %75, %65 : vector<8x128xi1>, vector<8x128xf32>
    %c0_35 = arith.constant 0 : index
    %c0_36 = arith.constant 0 : index
    %77 = vector.load %arg12[%c0_35, %c0_36] : memref<8x128xf32, #tpu.memory_space<vmem>>, vector<8x128xf32>
    tpu.vector_store %arg12[%c0_35, %c0_36], %76 {strides = array<i32>} : memref<8x128xf32, #tpu.memory_space<vmem>>, vector<8x128xf32>,
    return
  }
  func.func @transform_0(%arg0: i32) -> (i32, i32) {
    %c0_i32 = arith.constant 0 : i32
    %c0_i32_0 = arith.constant 0 : i32
    return %arg0, %c0_i32 : i32, i32
  }
  func.func @transform_1(%arg0: i32) -> (i32, i32) {
    %c0_i32 = arith.constant 0 : i32
    %c0_i32_0 = arith.constant 0 : i32
    %c0_i32_1 = arith.constant 0 : i32
    return %c0_i32, %c0_i32_0 : i32, i32
  }
  func.func @transform_2(%arg0: i32) -> (i32, i32) {
    %c0_i32 = arith.constant 0 : i32
    %c0_i32_0 = arith.constant 0 : i32
    %c0_i32_1 = arith.constant 0 : i32
    return %c0_i32, %c0_i32_0 : i32, i32
  }
  func.func @transform_3(%arg0: i32) -> (i32, i32) {
    %c0_i32 = arith.constant 0 : i32
    %c0_i32_0 = arith.constant 0 : i32
    %c0_i32_1 = arith.constant 0 : i32
    return %c0_i32, %c0_i32_0 : i32, i32
  }
  func.func @transform_4(%arg0: i32) -> (i32, i32) {
    %c0_i32 = arith.constant 0 : i32
    %c0_i32_0 = arith.constant 0 : i32
    %c0_i32_1 = arith.constant 0 : i32
    return %c0_i32, %c0_i32_0 : i32, i32
  }
  func.func @transform_5(%arg0: i32) -> (i32, i32) {
    %c0_i32 = arith.constant 0 : i32
    %c0_i32_0 = arith.constant 0 : i32
    %c0_i32_1 = arith.constant 0 : i32
    return %c0_i32, %c0_i32_0 : i32, i32
  }
  func.func @transform_6(%arg0: i32) -> (i32, i32) {
    %c0_i32 = arith.constant 0 : i32
    %c0_i32_0 = arith.constant 0 : i32
    %c0_i32_1 = arith.constant 0 : i32
    return %c0_i32, %c0_i32_0 : i32, i32
  }
  func.func @transform_7(%arg0: i32) -> (i32, i32) {
    %c0_i32 = arith.constant 0 : i32
    %c0_i32_0 = arith.constant 0 : i32
    %c0_i32_1 = arith.constant 0 : i32
    return %c0_i32, %c0_i32_0 : i32, i32
  }
  func.func @transform_8(%arg0: i32) -> (i32, i32) {
    %c0_i32 = arith.constant 0 : i32
    %c0_i32_0 = arith.constant 0 : i32
    %c0_i32_1 = arith.constant 0 : i32
    return %c0_i32, %c0_i32_0 : i32, i32
  }
  func.func @transform_9(%arg0: i32) -> (i32, i32) {
    %c0_i32 = arith.constant 0 : i32
    %c0_i32_0 = arith.constant 0 : i32
    %c0_i32_1 = arith.constant 0 : i32
    return %c0_i32, %c0_i32_0 : i32, i32
  }
  func.func @transform_10(%arg0: i32) -> (i32, i32) {
    %c0_i32 = arith.constant 0 : i32
    %c0_i32_0 = arith.constant 0 : i32
    %c0_i32_1 = arith.constant 0 : i32
    return %c0_i32, %c0_i32_0 : i32, i32
  }
  func.func @transform_11(%arg0: i32) -> (i32, i32) {
    %c0_i32 = arith.constant 0 : i32
    %c0_i32_0 = arith.constant 0 : i32
    return %arg0, %c0_i32 : i32, i32
  }
}

</mosaic_0001>

<llo_original>
// kernel: tpu_custom_call.1
$region0: #{tpu_custom_call.1}
  #allocation0 [shape = 'u32[]', space=smem, size = 0x4, offset = 0x4, fixed_abs, tag = 'smem constant byte address 0x4 - core index']
  #allocation1 [shape = 'u32[144,128]{1,0:T(1,128)}', space=vmem, size = 0x12000, scoped, tag = 'internal scratch']
  %s0 = inlined_call_operand.hbm [shape: f32[8,16], index: 0, kind: input, shape index: {}]
  %s1 = inlined_call_operand.hbm [shape: f32[16,64], index: 1, kind: input, shape index: {}]
  %s2 = inlined_call_operand.vmem [shape: f32[1,64], index: 2, kind: input, shape index: {}]
  %s3 = inlined_call_operand.vmem [shape: f32[1,64], index: 3, kind: input, shape index: {}]
  %s4 = inlined_call_operand.vmem [shape: f32[1,64], index: 4, kind: input, shape index: {}]
  %s5 = inlined_call_operand.hbm [shape: f32[64,64], index: 5, kind: input, shape index: {}]
  %s6 = inlined_call_operand.vmem [shape: f32[1,64], index: 6, kind: input, shape index: {}]
  %s7 = inlined_call_operand.vmem [shape: f32[1,64], index: 7, kind: input, shape index: {}]
  %s8 = inlined_call_operand.vmem [shape: f32[1,64], index: 8, kind: input, shape index: {}]
  %s9 = inlined_call_operand.hbm [shape: f32[64,128], index: 9, kind: input, shape index: {}]
  %s10 = inlined_call_operand.vmem [shape: f32[1,128], index: 10, kind: input, shape index: {}]
  %s11 = inlined_call_operand.hbm [shape: f32[8,128], index: 11, kind: output, shape index: {}]
  %s12 = sld [smem:[#allocation0]]
  $region70: #{tpu_custom_call.1} parent=0
    _
  %s14 = ssub.s32 1, %s12
  %s15 = scalar_select 0, %s14, %s12
  $region1: #{tpu_custom_call.1} parent=0
    #allocation2 [shape = 'u8[4096]{0}', space=vmem, size = 0x1000, scoped, tag = 'input window, operand 0, single buffered']
    #allocation3 [shape = 's32[1]{0}', space=sflag, size = 0x4, scoped, tag = 'scoped memory for tpu_custom_call.1']
    #allocation4 [shape = 's32[1]{0}', space=sflag, size = 0x4, scoped, tag = 'scoped memory for tpu_custom_call.1']
    #allocation5 [shape = 'u8[8192]{0}', space=vmem, size = 0x2000, scoped, tag = 'input window, operand 1, single buffered']
    #allocation6 [shape = 's32[1]{0}', space=sflag, size = 0x4, scoped, tag = 'scoped memory for tpu_custom_call.1']
    #allocation7 [shape = 'u8[32768]{0}', space=vmem, size = 0x8000, scoped, tag = 'input window, operand 5, single buffered']
    #allocation8 [shape = 'u8[32768]{0}', space=vmem, size = 0x8000, scoped, tag = 'input window, operand 9, single buffered']
    #allocation9 [shape = 's32[1]{0}', space=sflag, size = 0x4, scoped, tag = 'scoped memory for tpu_custom_call.1']
    #allocation10 [shape = 'u8[4096]{0}', space=vmem, size = 0x1000, scoped, tag = 'output window, operand 0, single buffered']
    %16 = vsyncpa [#allocation3], 0
    %17 = vsyncpa [#allocation6], 0
    %18 = vsyncpa [#allocation9], 0
    %19 = vsyncpa [#allocation4], 0
    // Predicated region
    $region2: #{tpu_custom_call.1} parent=1 // pred_check
      _
    $region3: #{tpu_custom_call.1} parent=1 // pred_check_branch
      %21 = sbr.rel (0) target = $region5
    $region4: #{tpu_custom_call.1} parent=1 // pred_region
      %s23 = ssub.s32 128, 128
      %24 = vsyncadd [#allocation3], %s23
      %s26 = sshll.u32 [#allocation2], 4
      %s27 = int_to_ptr.vmem [resolvable:$true] %s26
      %29 = dma.hbm_to_vmem [thread:$0]  %s0, 128, %s27, [#allocation3]
    $region5: #{tpu_custom_call.1} parent=1 // pred_fallthru
      _
    // Predicated region
    $region6: #{tpu_custom_call.1} parent=1 // pred_check
      _
    $region7: #{tpu_custom_call.1} parent=1 // pred_check_branch
      %31 = sbr.rel (0) target = $region9
    $region8: #{tpu_custom_call.1} parent=1 // pred_region
      %s33 = ssub.s32 256, 256
      %34 = vsyncadd [#allocation6], %s33
      %s35 = sshll.u32 [#allocation5], 4
      %s36 = int_to_ptr.vmem [resolvable:$true] %s35
      %41 = dma.hbm_to_vmem [thread:$0]  %s1, 256, %s36, [#allocation6], 128, 128, 8
    $region9: #{tpu_custom_call.1} parent=1 // pred_fallthru
      _
    // Predicated region
    $region10: #{tpu_custom_call.1} parent=1 // pred_check
      _
    $region11: #{tpu_custom_call.1} parent=1 // pred_check_branch
      %43 = sbr.rel (0) target = $region13
    $region12: #{tpu_custom_call.1} parent=1 // pred_region
      _
    $region13: #{tpu_custom_call.1} parent=1 // pred_fallthru
      _
    // Predicated region
    $region14: #{tpu_custom_call.1} parent=1 // pred_check
      _
    $region15: #{tpu_custom_call.1} parent=1 // pred_check_branch
      %45 = sbr.rel (0) target = $region17
    $region16: #{tpu_custom_call.1} parent=1 // pred_region
      _
    $region17: #{tpu_custom_call.1} parent=1 // pred_fallthru
      _
    // Predicated region
    $region18: #{tpu_custom_call.1} parent=1 // pred_check
      _
    $region19: #{tpu_custom_call.1} parent=1 // pred_check_branch
      %47 = sbr.rel (0) target = $region21
    $region20: #{tpu_custom_call.1} parent=1 // pred_region
      _
    $region21: #{tpu_custom_call.1} parent=1 // pred_fallthru
      _
    // Predicated region
    $region22: #{tpu_custom_call.1} parent=1 // pred_check
      _
    $region23: #{tpu_custom_call.1} parent=1 // pred_check_branch
      %49 = sbr.rel (0) target = $region25
    $region24: #{tpu_custom_call.1} parent=1 // pred_region
      %s51 = ssub.s32 1024, 1024
      %52 = vsyncadd [#allocation6], %s51
      %s53 = sshll.u32 [#allocation7], 4
      %s54 = int_to_ptr.vmem [resolvable:$true] %s53
      %59 = dma.hbm_to_vmem [thread:$0]  %s5, 1024, %s54, [#allocation6], 128, 128, 8
    $region25: #{tpu_custom_call.1} parent=1 // pred_fallthru
      _
    // Predicated region
    $region26: #{tpu_custom_call.1} parent=1 // pred_check
      _
    $region27: #{tpu_custom_call.1} parent=1 // pred_check_branch
      %61 = sbr.rel (0) target = $region29
    $region28: #{tpu_custom_call.1} parent=1 // pred_region
      _
    $region29: #{tpu_custom_call.1} parent=1 // pred_fallthru
      _
    // Predicated region
    $region30: #{tpu_custom_call.1} parent=1 // pred_check
      _
    $region31: #{tpu_custom_call.1} parent=1 // pred_check_branch
      %63 = sbr.rel (0) target = $region33
    $region32: #{tpu_custom_call.1} parent=1 // pred_region
      _
    $region33: #{tpu_custom_call.1} parent=1 // pred_fallthru
      _
    // Predicated region
    $region34: #{tpu_custom_call.1} parent=1 // pred_check
      _
    $region35: #{tpu_custom_call.1} parent=1 // pred_check_branch
      %65 = sbr.rel (0) target = $region37
    $region36: #{tpu_custom_call.1} parent=1 // pred_region
      _
    $region37: #{tpu_custom_call.1} parent=1 // pred_fallthru
      _
    // Predicated region
    $region38: #{tpu_custom_call.1} parent=1 // pred_check
      _
    $region39: #{tpu_custom_call.1} parent=1 // pred_check_branch
      %67 = sbr.rel (0) target = $region41
    $region40: #{tpu_custom_call.1} parent=1 // pred_region
      %s69 = ssub.s32 1024, 1024
      %70 = vsyncadd [#allocation9], %s69
      %s71 = sshll.u32 [#allocation8], 4
      %s72 = int_to_ptr.vmem [resolvable:$true] %s71
      %77 = dma.hbm_to_vmem [thread:$0]  %s9, 1024, %s72, [#allocation9], 128, 128, 8
    $region41: #{tpu_custom_call.1} parent=1 // pred_fallthru
      _
    // Predicated region
    $region42: #{tpu_custom_call.1} parent=1 // pred_check
      _
    $region43: #{tpu_custom_call.1} parent=1 // pred_check_branch
      %79 = sbr.rel (0) target = $region45
    $region44: #{tpu_custom_call.1} parent=1 // pred_region
      _
    $region45: #{tpu_custom_call.1} parent=1 // pred_fallthru
      _
    // Predicated region
    $region46: #{tpu_custom_call.1} parent=1 // pred_check
      _
    $region47: #{tpu_custom_call.1} parent=1 // pred_check_branch
      %81 = sbr.rel (0) target = $region49
    $region48: #{tpu_custom_call.1} parent=1 // pred_region
      %82 = dma.done [#allocation3], 128
    $region49: #{tpu_custom_call.1} parent=1 // pred_fallthru
      _
    // Predicated region
    $region50: #{tpu_custom_call.1} parent=1 // pred_check
      _
    $region51: #{tpu_custom_call.1} parent=1 // pred_check_branch
      %84 = sbr.rel (0) target = $region53
    $region52: #{tpu_custom_call.1} parent=1 // pred_region
      %85 = dma.done [#allocation6], 256
    $region53: #{tpu_custom_call.1} parent=1 // pred_fallthru
      _
    // Predicated region
    $region54: #{tpu_custom_call.1} parent=1 // pred_check
      _
    $region55: #{tpu_custom_call.1} parent=1 // pred_check_branch
      %87 = sbr.rel (0) target = $region57
    $region56: #{tpu_custom_call.1} parent=1 // pred_region
      %88 = dma.done [#allocation6], 1024
    $region57: #{tpu_custom_call.1} parent=1 // pred_fallthru
      _
    // Predicated region
    $region58: #{tpu_custom_call.1} parent=1 // pred_check
      _
    $region59: #{tpu_custom_call.1} parent=1 // pred_check_branch
      %90 = sbr.rel (0) target = $region61
    $region60: #{tpu_custom_call.1} parent=1 // pred_region
      %91 = dma.done [#allocation9], 1024
    $region61: #{tpu_custom_call.1} parent=1 // pred_fallthru
      _
    %v92 = vld [vmem:[#allocation2] sm:$0xff]
    %v93 = vld [vmem:[#allocation5] sm:$0xff]
    %v94 = vld [vmem:[#allocation5 + $0x8] sm:$0xff]
    %v95 = vld [vmem:[%s2] sm:$0x1]
    %v97 = vlaneseq
    %v98 = vshrl.u32 %v97, 7
    %v99 = vsub.s32 0, %v98
    %v100 = vrot.slane %v95, %v99
    %vm102 = vcmask 130048
    %v104 = vsel %vm102, %v92, 0
    %106 = vmatprep.subr.mxu0 0.0
    %107 = vmatpush1.msra.mxu0 0.0
    %108 = vmatprep.subr.mxu0 0.0
    %109 = vmatpush1.msra.mxu0 0.0
    %110 = vmatprep.subr.mxu0 0.0
    %111 = vmatpush1.msra.mxu0 0.0
    %112 = vmatprep.subr.mxu0 0.0
    %113 = vmatpush1.msra.mxu0 0.0
    %114 = vmatprep.subr.mxu0 0.0
    %115 = vmatpush1.msra.mxu0 0.0
    %116 = vmatprep.subr.mxu0 0.0
    %117 = vmatpush1.msra.mxu0 0.0
    %118 = vmatprep.subr.mxu0 0.0
    %119 = vmatpush1.msra.mxu0 0.0
    %120 = vmatprep.subr.mxu0 0.0
    %121 = vmatpush1.msra.mxu0 0.0
    %122 = vmatprep.subr.mxu0 0.0
    %123 = vmatpush1.msra.mxu0 0.0
    %124 = vmatprep.subr.mxu0 0.0
    %125 = vmatpush1.msra.mxu0 0.0
    %126 = vmatprep.subr.mxu0 0.0
    %127 = vmatpush1.msra.mxu0 0.0
    %128 = vmatprep.subr.mxu0 0.0
    %129 = vmatpush1.msra.mxu0 0.0
    %130 = vmatprep.subr.mxu0 0.0
    %131 = vmatpush1.msra.mxu0 0.0
    %132 = vmatprep.subr.mxu0 0.0
    %133 = vmatpush1.msra.mxu0 0.0
    %134 = vmatprep.subr.mxu0 0.0
    %135 = vmatpush1.msra.mxu0 %v94
    %136 = vmatprep.subr.mxu0 0.0
    %137 = vmatpush1.msra.mxu0 %v93
    %138 = vmatprep.subr.mxu0 0.0
    %139 = vmatpush2.msra.mxu0 0.0
    %140 = vmatprep.subr.mxu0 0.0
    %141 = vmatpush2.msra.mxu0 0.0
    %142 = vmatprep.subr.mxu0 0.0
    %143 = vmatpush2.msra.mxu0 0.0
    %144 = vmatprep.subr.mxu0 0.0
    %145 = vmatpush2.msra.mxu0 0.0
    %146 = vmatprep.subr.mxu0 0.0
    %147 = vmatpush2.msra.mxu0 0.0
    %148 = vmatprep.subr.mxu0 0.0
    %149 = vmatpush2.msra.mxu0 0.0
    %150 = vmatprep.subr.mxu0 0.0
    %151 = vmatpush2.msra.mxu0 0.0
    %152 = vmatprep.subr.mxu0 0.0
    %153 = vmatpush2.msra.mxu0 0.0
    %154 = vmatprep.subr.mxu0 0.0
    %155 = vmatpush2.msra.mxu0 0.0
    %156 = vmatprep.subr.mxu0 0.0
    %157 = vmatpush2.msra.mxu0 0.0
    %158 = vmatprep.subr.mxu0 0.0
    %159 = vmatpush2.msra.mxu0 0.0
    %160 = vmatprep.subr.mxu0 0.0
    %161 = vmatpush2.msra.mxu0 0.0
    %162 = vmatprep.subr.mxu0 0.0
    %163 = vmatpush2.msra.mxu0 0.0
    %164 = vmatprep.subr.mxu0 0.0
    %165 = vmatpush2.msra.mxu0 0.0
    %166 = vmatprep.subr.mxu0 0.0
    %167 = vmatpush2.msra.mxu0 0.0
    %168 = vmatprep.subr.mxu0 0.0
    %169 = vmatpush2.msra.mxu0 0.0
    %170 = vmatprep.mubr.f32.mxu0 0.0
    %171 = vmatmul.mubr.f32.gmra.mxu0 %v104
    %v172 = vpop.f32.mrf.mxu0
    %v173 = vadd.f32 %v100, %v172
    %v174 = vpop.f32.mrf.mxu0
    %175 = vdwg.mxu0
    %v176 = vtanh.pop %v173
    %v177 = vld [vmem:[%s3] sm:$0x1]
    %v178 = vld [vmem:[%s4] sm:$0x1]
    %vm179 = vcmask 523264
    %v180 = vsel %vm179, %v176, 0.0
    %181 = vadd.xlane.f32.xlu0 %v180
    %v182 = vpop.xlane.xlu0 %181
    %v183 = vrcp.pop 64.0
    %v184 = vmul.f32 %v182, %v183
    %v185 = vmul.f32 %v176, %v176
    %v186 = vsel %vm179, %v185, 0.0
    %187 = vadd.xlane.f32.xlu0 %v186
    %v188 = vpop.xlane.xlu0 %187
    %v189 = vmul.f32 %v188, %v183
    %v190 = vmul.f32 %v184, %v184
    %v191 = vsub.f32 %v189, %v190
    %v192 = vsub.f32 %v176, %v184
    %v193 = vadd.f32 %v191, 1e-05
    %v194 = vrsqrt.pop %v193
    %v195 = vmul.f32 %v192, %v194
    %v197 = vlaneseq
    %v198 = vshrl.u32 %v197, 7
    %v199 = vsub.s32 0, %v198
    %v200 = vrot.slane %v177, %v199
    %v202 = vmul.f32 %v195, %v200
    %v204 = vlaneseq
    %v205 = vshrl.u32 %v204, 7
    %v206 = vsub.s32 0, %v205
    %v207 = vrot.slane %v178, %v206
    %v209 = vadd.f32 %v202, %v207
    %v210 = vld [vmem:[#allocation7] sm:$0xff]
    %v211 = vld [vmem:[#allocation7 + $0x8] sm:$0xff]
    %v212 = vld [vmem:[#allocation7 + $0x10] sm:$0xff]
    %v213 = vld [vmem:[#allocation7 + $0x18] sm:$0xff]
    %v214 = vld [vmem:[#allocation7 + $0x20] sm:$0xff]
    %v215 = vld [vmem:[#allocation7 + $0x28] sm:$0xff]
    %v216 = vld [vmem:[#allocation7 + $0x30] sm:$0xff]
    %v217 = vld [vmem:[#allocation7 + $0x38] sm:$0xff]
    %v218 = vld [vmem:[%s6] sm:$0x1]
    %v220 = vlaneseq
    %v221 = vshrl.u32 %v220, 7
    %v222 = vsub.s32 0, %v221
    %v223 = vrot.slane %v218, %v222
    %v226 = vsel %vm179, %v209, 0
    %228 = vmatprep.subr.mxu0 0.0
    %229 = vmatpush1.msra.mxu0 0.0
    %230 = vmatprep.subr.mxu0 0.0
    %231 = vmatpush1.msra.mxu0 0.0
    %232 = vmatprep.subr.mxu0 0.0
    %233 = vmatpush1.msra.mxu0 0.0
    %234 = vmatprep.subr.mxu0 0.0
    %235 = vmatpush1.msra.mxu0 0.0
    %236 = vmatprep.subr.mxu0 0.0
    %237 = vmatpush1.msra.mxu0 0.0
    %238 = vmatprep.subr.mxu0 0.0
    %239 = vmatpush1.msra.mxu0 0.0
    %240 = vmatprep.subr.mxu0 0.0
    %241 = vmatpush1.msra.mxu0 0.0
    %242 = vmatprep.subr.mxu0 0.0
    %243 = vmatpush1.msra.mxu0 0.0
    %244 = vmatprep.subr.mxu0 0.0
    %245 = vmatpush1.msra.mxu0 %v217
    %246 = vmatprep.subr.mxu0 0.0
    %247 = vmatpush1.msra.mxu0 %v216
    %248 = vmatprep.subr.mxu0 0.0
    %249 = vmatpush1.msra.mxu0 %v215
    %250 = vmatprep.subr.mxu0 0.0
    %251 = vmatpush1.msra.mxu0 %v214
    %252 = vmatprep.subr.mxu0 0.0
    %253 = vmatpush1.msra.mxu0 %v213
    %254 = vmatprep.subr.mxu0 0.0
    %255 = vmatpush1.msra.mxu0 %v212
    %256 = vmatprep.subr.mxu0 0.0
    %257 = vmatpush1.msra.mxu0 %v211
    %258 = vmatprep.subr.mxu0 0.0
    %259 = vmatpush1.msra.mxu0 %v210
    %260 = vmatprep.subr.mxu0 0.0
    %261 = vmatpush2.msra.mxu0 0.0
    %262 = vmatprep.subr.mxu0 0.0
    %263 = vmatpush2.msra.mxu0 0.0
    %264 = vmatprep.subr.mxu0 0.0
    %265 = vmatpush2.msra.mxu0 0.0
    %266 = vmatprep.subr.mxu0 0.0
    %267 = vmatpush2.msra.mxu0 0.0
    %268 = vmatprep.subr.mxu0 0.0
    %269 = vmatpush2.msra.mxu0 0.0
    %270 = vmatprep.subr.mxu0 0.0
    %271 = vmatpush2.msra.mxu0 0.0
    %272 = vmatprep.subr.mxu0 0.0
    %273 = vmatpush2.msra.mxu0 0.0
    %274 = vmatprep.subr.mxu0 0.0
    %275 = vmatpush2.msra.mxu0 0.0
    %276 = vmatprep.subr.mxu0 0.0
    %277 = vmatpush2.msra.mxu0 0.0
    %278 = vmatprep.subr.mxu0 0.0
    %279 = vmatpush2.msra.mxu0 0.0
    %280 = vmatprep.subr.mxu0 0.0
    %281 = vmatpush2.msra.mxu0 0.0
    %282 = vmatprep.subr.mxu0 0.0
    %283 = vmatpush2.msra.mxu0 0.0
    %284 = vmatprep.subr.mxu0 0.0
    %285 = vmatpush2.msra.mxu0 0.0
    %286 = vmatprep.subr.mxu0 0.0
    %287 = vmatpush2.msra.mxu0 0.0
    %288 = vmatprep.subr.mxu0 0.0
    %289 = vmatpush2.msra.mxu0 0.0
    %290 = vmatprep.subr.mxu0 0.0
    %291 = vmatpush2.msra.mxu0 0.0
    %292 = vmatprep.mubr.f32.mxu0 0.0
    %293 = vmatmul.mubr.f32.gmra.mxu0 %v226
    %v294 = vpop.f32.mrf.mxu0
    %v295 = vadd.f32 %v223, %v294
    %v296 = vpop.f32.mrf.mxu0
    %297 = vdwg.mxu0
    %v298 = vtanh.pop %v295
    %v299 = vld [vmem:[%s7] sm:$0x1]
    %v300 = vld [vmem:[%s8] sm:$0x1]
    %v301 = vsel %vm179, %v298, 0.0
    %302 = vadd.xlane.f32.xlu0 %v301
    %v303 = vpop.xlane.xlu0 %302
    %v304 = vmul.f32 %v303, %v183
    %v305 = vmul.f32 %v298, %v298
    %v306 = vsel %vm179, %v305, 0.0
    %307 = vadd.xlane.f32.xlu0 %v306
    %v308 = vpop.xlane.xlu0 %307
    %v309 = vmul.f32 %v308, %v183
    %v310 = vmul.f32 %v304, %v304
    %v311 = vsub.f32 %v309, %v310
    %v312 = vsub.f32 %v298, %v304
    %v313 = vadd.f32 %v311, 1e-05
    %v314 = vrsqrt.pop %v313
    %v315 = vmul.f32 %v312, %v314
    %v317 = vlaneseq
    %v318 = vshrl.u32 %v317, 7
    %v319 = vsub.s32 0, %v318
    %v320 = vrot.slane %v299, %v319
    %v322 = vmul.f32 %v315, %v320
    %v324 = vlaneseq
    %v325 = vshrl.u32 %v324, 7
    %v326 = vsub.s32 0, %v325
    %v327 = vrot.slane %v300, %v326
    %v329 = vadd.f32 %v322, %v327
    %v330 = vld [vmem:[#allocation8] sm:$0xff]
    %v331 = vld [vmem:[#allocation8 + $0x8] sm:$0xff]
    %v332 = vld [vmem:[#allocation8 + $0x10] sm:$0xff]
    %v333 = vld [vmem:[#allocation8 + $0x18] sm:$0xff]
    %v334 = vld [vmem:[#allocation8 + $0x20] sm:$0xff]
    %v335 = vld [vmem:[#allocation8 + $0x28] sm:$0xff]
    %v336 = vld [vmem:[#allocation8 + $0x30] sm:$0xff]
    %v337 = vld [vmem:[#allocation8 + $0x38] sm:$0xff]
    %v338 = vld [vmem:[%s10] sm:$0x1]
    %v340 = vlaneseq
    %v341 = vshrl.u32 %v340, 7
    %v342 = vsub.s32 0, %v341
    %v343 = vrot.slane %v338, %v342
    %v346 = vsel %vm179, %v329, 0
    %348 = vmatprep.subr.mxu0 0.0
    %349 = vmatpush1.msra.mxu0 0.0
    %350 = vmatprep.subr.mxu0 0.0
    %351 = vmatpush1.msra.mxu0 0.0
    %352 = vmatprep.subr.mxu0 0.0
    %353 = vmatpush1.msra.mxu0 0.0
    %354 = vmatprep.subr.mxu0 0.0
    %355 = vmatpush1.msra.mxu0 0.0
    %356 = vmatprep.subr.mxu0 0.0
    %357 = vmatpush1.msra.mxu0 0.0
    %358 = vmatprep.subr.mxu0 0.0
    %359 = vmatpush1.msra.mxu0 0.0
    %360 = vmatprep.subr.mxu0 0.0
    %361 = vmatpush1.msra.mxu0 0.0
    %362 = vmatprep.subr.mxu0 0.0
    %363 = vmatpush1.msra.mxu0 0.0
    %364 = vmatprep.subr.mxu0 0.0
    %365 = vmatpush1.msra.mxu0 %v337
    %366 = vmatprep.subr.mxu0 0.0
    %367 = vmatpush1.msra.mxu0 %v336
    %368 = vmatprep.subr.mxu0 0.0
    %369 = vmatpush1.msra.mxu0 %v335
    %370 = vmatprep.subr.mxu0 0.0
    %371 = vmatpush1.msra.mxu0 %v334
    %372 = vmatprep.subr.mxu0 0.0
    %373 = vmatpush1.msra.mxu0 %v333
    %374 = vmatprep.subr.mxu0 0.0
    %375 = vmatpush1.msra.mxu0 %v332
    %376 = vmatprep.subr.mxu0 0.0
    %377 = vmatpush1.msra.mxu0 %v331
    %378 = vmatprep.subr.mxu0 0.0
    %379 = vmatpush1.msra.mxu0 %v330
    %380 = vmatprep.subr.mxu0 0.0
    %381 = vmatpush2.msra.mxu0 0.0
    %382 = vmatprep.subr.mxu0 0.0
    %383 = vmatpush2.msra.mxu0 0.0
    %384 = vmatprep.subr.mxu0 0.0
    %385 = vmatpush2.msra.mxu0 0.0
    %386 = vmatprep.subr.mxu0 0.0
    %387 = vmatpush2.msra.mxu0 0.0
    %388 = vmatprep.subr.mxu0 0.0
    %389 = vmatpush2.msra.mxu0 0.0
    %390 = vmatprep.subr.mxu0 0.0
    %391 = vmatpush2.msra.mxu0 0.0
    %392 = vmatprep.subr.mxu0 0.0
    %393 = vmatpush2.msra.mxu0 0.0
    %394 = vmatprep.subr.mxu0 0.0
    %395 = vmatpush2.msra.mxu0 0.0
    %396 = vmatprep.subr.mxu0 0.0
    %397 = vmatpush2.msra.mxu0 0.0
    %398 = vmatprep.subr.mxu0 0.0
    %399 = vmatpush2.msra.mxu0 0.0
    %400 = vmatprep.subr.mxu0 0.0
    %401 = vmatpush2.msra.mxu0 0.0
    %402 = vmatprep.subr.mxu0 0.0
    %403 = vmatpush2.msra.mxu0 0.0
    %404 = vmatprep.subr.mxu0 0.0
    %405 = vmatpush2.msra.mxu0 0.0
    %406 = vmatprep.subr.mxu0 0.0
    %407 = vmatpush2.msra.mxu0 0.0
    %408 = vmatprep.subr.mxu0 0.0
    %409 = vmatpush2.msra.mxu0 0.0
    %410 = vmatprep.subr.mxu0 0.0
    %411 = vmatpush2.msra.mxu0 0.0
    %412 = vmatprep.mubr.f32.mxu0 0.0
    %413 = vmatmul.mubr.f32.gmra.mxu0 %v346
    %v414 = vpop.f32.mrf.mxu0
    %v415 = vadd.f32 %v343, %v414
    %v416 = vpop.f32.mrf.mxu0
    %417 = vdwg.mxu0
    %v418 = vlaneseq
    %v419 = vand.u32 %v418, 127
    %vm420 = vcmp.ge.s32.totalorder %v419, 8
    %vm421 = vcmp.lt.s32.totalorder %v419, 16
    %vm422 = vmand %vm420, %vm421
    %v423 = vmax.f32 %v415, -1.0
    %v424 = vmin.f32 %v423, 1.0
    %v425 = vsel %vm422, %v424, %v415
    %426 = vst [vmem:[#allocation10] sm:$0xff] %v425
    // Predicated region
    $region62: #{tpu_custom_call.1} parent=1 // pred_check
      _
    $region63: #{tpu_custom_call.1} parent=1 // pred_check_branch
      %428 = sbr.rel (0) target = $region65
    $region64: #{tpu_custom_call.1} parent=1 // pred_region
      %s430 = ssub.s32 128, 128
      %431 = vsyncadd [#allocation4], %s430
      %s433 = sshll.u32 [#allocation10], 4
      %s434 = int_to_ptr.vmem [resolvable:$true] %s433
      %436 = dma.vmem_to_hbm [thread:$0]  %s434, 128, %s11, [#allocation4]
    $region65: #{tpu_custom_call.1} parent=1 // pred_fallthru
      _
    // Predicated region
    $region66: #{tpu_custom_call.1} parent=1 // pred_check
      _
    $region67: #{tpu_custom_call.1} parent=1 // pred_check_branch
      %438 = sbr.rel (0) target = $region69
    $region68: #{tpu_custom_call.1} parent=1 // pred_region
      %439 = dma.done [#allocation4], 128
    $region69: #{tpu_custom_call.1} parent=1 // pred_fallthru
      _
    %440 = vsyncpa [#allocation3], 1
    %441 = vsyncpa [#allocation6], 1
    %442 = vsyncpa [#allocation9], 1
    %443 = vsyncpa [#allocation4], 1

</llo_original>
